<compile_context>
chip_gen: v6e
topology: v6e:2x2x1
jax: 0.10.0
libtpu: 0.0.40
codegen_flags: <defaults>
</compile_context>

<pallas_src>
import functools

import jax
import jax.numpy as jnp
from jax import lax
from jax.experimental import pallas as pl
from jax.experimental.pallas import tpu as pltpu

_EPS = 1e-6


def _round_up(v, m):
    return (v + m - 1) // m * m


def _vmem_capacity_bytes():
    try:
        info = pltpu.get_tpu_info()
        cap = int(getattr(info, "vmem_capacity_bytes", 0))
        if cap > 0:
            return cap
    except Exception:
        pass
    return 64 * 1024 * 1024  # conservative default (v7x per-core VMEM)


def _row_tile(n, d, itemsize, byte_budget, n_streamed):
    """Rows per tile so `n_streamed` double-buffered (tm, d) tiles fit the budget."""
    per_row = d * max(itemsize, 4) * 2 * n_streamed
    tm = byte_budget // max(per_row, 1)
    tm = max(8, min(2048, (tm // 8) * 8))
    return int(min(tm, _round_up(n, 8)))


# ------------------------------------------------------------- fused single pass
def _fused_kernel(x_ref, o_ref, *, mode, scale, n_rows):
    x = x_ref[...].astype(jnp.float32)
    col_mean = jnp.sum(x, axis=0, keepdims=True) * (1.0 / n_rows)      # [1, D]
    if mode == "PN":
        xc = x - col_mean
        sum_xc2 = jnp.sum(xc * xc, keepdims=True)                      # [1, 1]
        s = scale * lax.rsqrt(_EPS + sum_xc2 * (1.0 / n_rows))         # EUP
        o_ref[...] = (xc * s).astype(o_ref.dtype)
    elif mode == "PN-SI":
        xc = x - col_mean
        inv = lax.rsqrt(_EPS + jnp.sum(xc * xc, axis=1, keepdims=True))
        o_ref[...] = (xc * (scale * inv)).astype(o_ref.dtype)
    else:  # "PN-SCS"
        inv = lax.rsqrt(_EPS + jnp.sum(x * x, axis=1, keepdims=True))
        o_ref[...] = (x * (scale * inv) - col_mean).astype(o_ref.dtype)


# ----------------------------------------------------- streaming pass 1: stats
def _stats_kernel(x_ref, stat_ref, *, mode, scale, n_rows, tm, ragged):
    i = pl.program_id(0)

    @pl.when(i == 0)
    def _init():
        stat_ref[...] = jnp.zeros_like(stat_ref)

    x = x_ref[...].astype(jnp.float32)
    if ragged:
        # Mask the out-of-bounds rows of the partial last tile before reducing.
        row = i * tm + lax.broadcasted_iota(jnp.int32, x.shape, 0)
        x = jnp.where(row < n_rows, x, 0.0)
    stat_ref[0:1, :] += jnp.sum(x, axis=0, keepdims=True)       # col_sum
    stat_ref[1:2, :] += jnp.sum(x * x, axis=0, keepdims=True)   # col_sum_sq

    @pl.when(i == pl.num_programs(0) - 1)
    def _finalize():
        inv_n = 1.0 / n_rows
        col_mean = stat_ref[0:1, :] * inv_n                      # [1, D]
        if mode == "PN":
            # sum_i ||x_i - mean||^2 = sum(x^2) - N * ||mean||^2
            # TODO(synk): re-center with a second stats pass if inputs ever carry
            # very large per-column means (f32 cancellation); fine for activations.
            sumsq = jnp.sum(stat_ref[1:2, :], keepdims=True)     # [1, 1]
            sum_xc2 = jnp.maximum(
                sumsq - n_rows * jnp.sum(col_mean * col_mean, keepdims=True), 0.0)
            s = scale * lax.rsqrt(_EPS + sum_xc2 * inv_n)        # [1, 1]
            stat_ref[1:2, :] = jnp.zeros_like(col_mean) + s      # broadcast scalar
        stat_ref[0:1, :] = col_mean


# ------------------------------------------------- streaming pass 2: normalize
def _norm_kernel(x_ref, p_ref, o_ref, *, mode, scale):
    x = x_ref[...].astype(jnp.float32)
    col_mean = p_ref[0:1, :]
    if mode == "PN":
        o_ref[...] = ((x - col_mean) * p_ref[1:2, :]).astype(o_ref.dtype)
    elif mode == "PN-SI":
        xc = x - col_mean
        inv = lax.rsqrt(_EPS + jnp.sum(xc * xc, axis=1, keepdims=True))
        o_ref[...] = (xc * (scale * inv)).astype(o_ref.dtype)
    else:  # "PN-SCS"
        inv = lax.rsqrt(_EPS + jnp.sum(x * x, axis=1, keepdims=True))
        o_ref[...] = (x * (scale * inv) - col_mean).astype(o_ref.dtype)


# ------------------------------------------------------------------- dispatcher
def pairnorm(x: jax.Array, mode: str = "PN", scale: float = 1.0, *,
             force_path: str | None = None, row_tile: int | None = None) -> jax.Array:
    """PairNorm forward. x: [N, D] (rows = nodes, last dim = features)."""
    assert mode in ["None", "PN", "PN-SI", "PN-SCS"]
    if mode == "None":
        return x

    N, D = x.shape
    scale = float(scale)
    itemsize = x.dtype.itemsize

    cap = _vmem_capacity_bytes()
    vmem_limit = min(cap // 2, 64 * 1024 * 1024)
    cparams = dict(vmem_limit_bytes=vmem_limit)

    # ---- fused single-pass path: whole array (+ f32 temps) resident in VMEM ----
    fused_budget = vmem_limit // 2
    use_fused = (force_path != "streaming") and (
        force_path == "fused" or N * D * 4 * 4 <= fused_budget)
    if use_fused:
        return pl.pallas_call(
            functools.partial(_fused_kernel, mode=mode, scale=scale, n_rows=N),
            out_shape=jax.ShapeDtypeStruct((N, D), x.dtype),
            compiler_params=pltpu.CompilerParams(**cparams),
        )(x)

    # ------------------------------- streaming two-pass path -------------------
    tile_budget = (vmem_limit * 3) // 4
    if row_tile is not None:
        tm1 = tm2 = int(max(8, _round_up(row_tile, 8)))
    else:
        tm1 = _row_tile(N, D, itemsize, tile_budget, n_streamed=1)  # stats: in only
        tm2 = _row_tile(N, D, itemsize, tile_budget, n_streamed=2)  # norm: in + out

    # pass 1: column sums / sums-of-squares, finalized to params in-kernel.
    params = pl.pallas_call(
        functools.partial(_stats_kernel, mode=mode, scale=scale, n_rows=N,
                          tm=tm1, ragged=(N % tm1 != 0)),
        out_shape=jax.ShapeDtypeStruct((8, D), jnp.float32),
        grid=(pl.cdiv(N, tm1),),
        in_specs=[pl.BlockSpec((tm1, D), lambda i: (i, 0))],
        out_specs=pl.BlockSpec((8, D), lambda i: (0, 0)),   # resident accumulator
        compiler_params=pltpu.CompilerParams(
            dimension_semantics=("arbitrary",), **cparams),
    )(x)
    # TODO(synk): on v7x, shard pass 1 across both TensorCores (grid (2, ...) with
    # per-core partial stats combined in pass 2) for ~2x on the stats pass.

    # pass 2: normalize independent row tiles (megacore "parallel").
    return pl.pallas_call(
        functools.partial(_norm_kernel, mode=mode, scale=scale),
        out_shape=jax.ShapeDtypeStruct((N, D), x.dtype),
        grid=(pl.cdiv(N, tm2),),
        in_specs=[pl.BlockSpec((tm2, D), lambda i: (i, 0)),
                  pl.BlockSpec((8, D), lambda i: (0, 0))],   # resident params
        out_specs=pl.BlockSpec((tm2, D), lambda i: (i, 0)),
        compiler_params=pltpu.CompilerParams(
            dimension_semantics=("parallel",), **cparams),
    )(x, params)


# ------------------------------------------------------------------ pure-JAX ref
def _pairnorm_ref(x, mode="PN", scale=1.0):
    # Mirrors the PyTorch forward exactly.
    if mode == "None":
        return x
    x = x.astype(jnp.float32)
    col_mean = x.mean(axis=0)
    if mode == "PN":
        xc = x - col_mean
        rownorm_mean = jnp.sqrt(1e-6 + (xc ** 2).sum(axis=1).mean())
        return scale * xc / rownorm_mean
    if mode == "PN-SI":
        xc = x - col_mean
        rn = jnp.sqrt(1e-6 + (xc ** 2).sum(axis=1, keepdims=True))
        return scale * xc / rn
    rn = jnp.sqrt(1e-6 + (x ** 2).sum(axis=1, keepdims=True))
    return scale * x / rn - col_mean


if __name__ == "__main__":
    key = jax.random.PRNGKey(0)
    ok = True

    # (8, 32): the module's typical node-feature shape -> fused single-pass path.
    # (300, 96) with a forced 128-row streaming tile: exercises the two-pass
    # streaming path, the resident stats accumulator, and ragged-tile masking.
    cases = [((8, 32), None, None), ((300, 96), "streaming", 128)]
    for (shape, path, rt) in cases:
        key, sub = jax.random.split(key)
        x = jax.random.normal(sub, shape, dtype=jnp.float32)
        for mode in ["None", "PN", "PN-SI", "PN-SCS"]:
            out = jax.block_until_ready(
                pairnorm(x, mode=mode, scale=1.0, force_path=path, row_tile=rt))
            ref = _pairnorm_ref(x, mode=mode, scale=1.0)
            good = bool(jnp.allclose(out, ref.astype(out.dtype),
                                     atol=1e-5, rtol=1e-5))
            if not good:
                print(f"MISMATCH mode={mode} shape={shape} path={path}")
            ok &= good

    if ok:
        print("KERNEL_OK")
</pallas_src>

<mosaic_0001>
module attributes {stable_mosaic.version = 11 : i64} {
  func.func @_fused_kernel(%arg0: memref<8x32xf32, #tpu.memory_space<vmem>>, %arg1: memref<8x32xf32, #tpu.memory_space<vmem>>) attributes {dimension_semantics = [], scalar_prefetch = 0 : i64, scratch_operands = 0 : i64, tpu.core_type = #tpu.core_type<tc>} {
    %c0 = arith.constant 0 : index
    %c0_0 = arith.constant 0 : index
    %0 = vector.load %arg0[%c0, %c0_0] : memref<8x32xf32, #tpu.memory_space<vmem>>, vector<8x32xf32>
    %cst = arith.constant dense<0.000000e+00> : vector<32xf32>
    %1 = vector.multi_reduction <add>, %0, %cst [0] : vector<8x32xf32> to vector<32xf32>
    %2 = vector.shape_cast %1 : vector<32xf32> to vector<1x32xf32>
    %cst_1 = arith.constant 1.250000e-01 : f32
    %3 = vector.broadcast %cst_1 : f32 to vector<1x32xf32>
    %4 = arith.mulf %2, %3 : vector<1x32xf32>
    %5 = vector.broadcast %4 : vector<1x32xf32> to vector<8x32xf32>
    %6 = arith.subf %0, %5 : vector<8x32xf32>
    %7 = arith.mulf %6, %6 : vector<8x32xf32>
    %8 = vector.shape_cast %7 : vector<8x32xf32> to vector<1x8x32xf32>
    %cst_2 = arith.constant dense<0.000000e+00> : vector<1xf32>
    %9 = vector.multi_reduction <add>, %8, %cst_2 [1, 2] : vector<1x8x32xf32> to vector<1xf32>
    %10 = vector.shape_cast %9 : vector<1xf32> to vector<1x1x1xf32>
    %11 = vector.extract %10[0, 0, 0] : f32 from vector<1x1x1xf32>
    %12 = vector.broadcast %11 : f32 to vector<1x1xf32>
    %cst_3 = arith.constant 1.250000e-01 : f32
    %13 = vector.broadcast %cst_3 : f32 to vector<1x1xf32>
    %14 = arith.mulf %12, %13 : vector<1x1xf32>
    %cst_4 = arith.constant 9.99999997E-7 : f32
    %15 = vector.broadcast %cst_4 : f32 to vector<1x1xf32>
    %16 = arith.addf %15, %14 : vector<1x1xf32>
    %17 = math.rsqrt %16 : vector<1x1xf32>
    %cst_5 = arith.constant 1.000000e+00 : f32
    %18 = vector.broadcast %cst_5 : f32 to vector<1x1xf32>
    %19 = arith.mulf %18, %17 : vector<1x1xf32>
    %20 = vector.broadcast %19 : vector<1x1xf32> to vector<8x32xf32>
    %21 = arith.mulf %6, %20 : vector<8x32xf32>
    %c0_6 = arith.constant 0 : index
    %c0_7 = arith.constant 0 : index
    %22 = vector.load %arg1[%c0_6, %c0_7] : memref<8x32xf32, #tpu.memory_space<vmem>>, vector<8x32xf32>
    tpu.vector_store %arg1[%c0_6, %c0_7], %21 {strides = array<i32>} : memref<8x32xf32, #tpu.memory_space<vmem>>, vector<8x32xf32>,
    return
  }
}

</mosaic_0001>

<llo_original>
// kernel: tpu_custom_call.1
$region0: #{tpu_custom_call.1}
  #allocation0 [shape = 'u32[]', space=smem, size = 0x4, offset = 0x4, fixed_abs, tag = 'smem constant byte address 0x4 - core index']
  #allocation1 [shape = 'u32[144,128]{1,0:T(1,128)}', space=vmem, size = 0x12000, scoped, tag = 'internal scratch']
  %s0 = inlined_call_operand.hbm [shape: f32[8,32], index: 0, kind: input, shape index: {}]
  %s1 = inlined_call_operand.hbm [shape: f32[8,32], index: 1, kind: output, shape index: {}]
  %s2 = sld [smem:[#allocation0]]
  $region18: #{tpu_custom_call.1} parent=0
    _
  %s4 = ssub.s32 1, %s2
  %s5 = scalar_select 0, %s4, %s2
  $region1: #{tpu_custom_call.1} parent=0
    #allocation2 [shape = 'u8[4096]{0}', space=vmem, size = 0x1000, scoped, tag = 'input window, operand 0, single buffered']
    #allocation3 [shape = 's32[1]{0}', space=sflag, size = 0x4, scoped, tag = 'scoped memory for tpu_custom_call.1']
    #allocation4 [shape = 's32[1]{0}', space=sflag, size = 0x4, scoped, tag = 'scoped memory for tpu_custom_call.1']
    #allocation5 [shape = 'u8[4096]{0}', space=vmem, size = 0x1000, scoped, tag = 'output window, operand 0, single buffered']
    %6 = vsyncpa [#allocation3], 0
    %7 = vsyncpa [#allocation4], 0
    // Predicated region
    $region2: #{tpu_custom_call.1} parent=1 // pred_check
      _
    $region3: #{tpu_custom_call.1} parent=1 // pred_check_branch
      %9 = sbr.rel (0) target = $region5
    $region4: #{tpu_custom_call.1} parent=1 // pred_region
      %s11 = ssub.s32 128, 128
      %12 = vsyncadd [#allocation3], %s11
      %s14 = sshll.u32 [#allocation2], 4
      %s15 = int_to_ptr.vmem [resolvable:$true] %s14
      %17 = dma.hbm_to_vmem [thread:$0]  %s0, 128, %s15, [#allocation3]
    $region5: #{tpu_custom_call.1} parent=1 // pred_fallthru
      _
    // Predicated region
    $region6: #{tpu_custom_call.1} parent=1 // pred_check
      _
    $region7: #{tpu_custom_call.1} parent=1 // pred_check_branch
      %19 = sbr.rel (0) target = $region9
    $region8: #{tpu_custom_call.1} parent=1 // pred_region
      %20 = dma.done [#allocation3], 128
    $region9: #{tpu_custom_call.1} parent=1 // pred_fallthru
      _
    %v21 = vld [vmem:[#allocation2] sm:$0xff]
    %vm22 = vcmask 261120
    %v23 = vsel %vm22, %v21, 0.0
    %v24 = vrot.slane %v23, 4
    %v25 = vadd.f32 %v23, %v24
    %v26 = vrot.slane %v25, 2
    %v27 = vadd.f32 %v25, %v26
    %v28 = vrot.slane %v27, 1
    %v29 = vadd.f32 %v27, %v28
    %v30 = vmul.f32 %v29, 0.125
    %v31 = vsub.f32 %v21, %v30
    %v32 = vmul.f32 %v31, %v31
    %v33 = vsel %vm22, %v32, 0.0
    %34 = vadd.xlane.f32.xlu0 %v33
    %v35 = vpop.xlane.xlu0 %34
    %v36 = vrot.slane %v35, 4
    %v37 = vadd.f32 %v35, %v36
    %v38 = vrot.slane %v37, 2
    %v39 = vadd.f32 %v37, %v38
    %v40 = vrot.slane %v39, 1
    %v41 = vadd.f32 %v39, %v40
    %s42 = vtos %v41
    %v43 = vstv %s42
    %v44 = vmul.f32 %v43, 0.125
    %v45 = vadd.f32 %v44, 1e-06
    %v46 = vrsqrt.pop %v45
    %v47 = vmul.f32 %v31, %v46
    %48 = vst.msk [vmem:[#allocation5] sm:$0xff] %vm22, %v47
    // Predicated region
    $region10: #{tpu_custom_call.1} parent=1 // pred_check
      _
    $region11: #{tpu_custom_call.1} parent=1 // pred_check_branch
      %50 = sbr.rel (0) target = $region13
    $region12: #{tpu_custom_call.1} parent=1 // pred_region
      %s52 = ssub.s32 128, 128
      %53 = vsyncadd [#allocation4], %s52
      %s55 = sshll.u32 [#allocation5], 4
      %s56 = int_to_ptr.vmem [resolvable:$true] %s55
      %58 = dma.vmem_to_hbm [thread:$0]  %s56, 128, %s1, [#allocation4]
    $region13: #{tpu_custom_call.1} parent=1 // pred_fallthru
      _
    // Predicated region
    $region14: #{tpu_custom_call.1} parent=1 // pred_check
      _
    $region15: #{tpu_custom_call.1} parent=1 // pred_check_branch
      %60 = sbr.rel (0) target = $region17
    $region16: #{tpu_custom_call.1} parent=1 // pred_region
      %61 = dma.done [#allocation4], 128
    $region17: #{tpu_custom_call.1} parent=1 // pred_fallthru
      _
    %62 = vsyncpa [#allocation3], 1
    %63 = vsyncpa [#allocation4], 1

</llo_original>
